<compile_context>
chip_gen: v6e
topology: v6e:2x2x1
jax: 0.10.0
libtpu: 0.0.40
codegen_flags: <defaults>
</compile_context>

<pallas_src>
import functools

import jax
import jax.numpy as jnp
from jax import lax
from jax.experimental import pallas as pl
from jax.experimental.pallas import tpu as pltpu

BLOCK_SIZE = 128      # T
EMBEDDING_DIM = 128   # C
HEAD_SIZE = 32
BATCH_BLOCK = 16      # batch elements processed per grid step

_NEG_LARGE = -1e30    # large finite negative (same softmax result as -inf, NaN-safe)


def _attention_head_kernel(x_ref, pad_ref, w_ref, o_ref, *, bt, head_size):
    # x_ref:   (bt, T, C)     bf16 embedding block
    # pad_ref: (bt, T)        f32 pad mask (1.0 keep / 0.0 pad)
    # w_ref:   (C, C + hs)    bf16 fused [Wqk = scale * Wq @ Wk^T | Wv]
    # o_ref:   (bt, T, hs)    f32 output block
    T, C = x_ref.shape[1], x_ref.shape[2]
    hs = head_size

    x = x_ref[...]                                                   # (bt, T, C) bf16
    x2d = x.reshape(bt * T, C)

    # fused projection: one big MXU matmul (M = bt*T, K = C = 128, N = C + hs = 160)
    yv = jnp.dot(x2d, w_ref[...], preferred_element_type=jnp.float32)      # (bt*T, C+hs) f32
    y = yv[:, :C].reshape(bt, T, C).astype(jnp.bfloat16)             # "query-side" = x @ (s*Wq@Wk^T)
    v = yv[:, C:].reshape(bt, T, hs).astype(jnp.bfloat16)            # values

    # scores = (x Wq s)(x Wk)^T = y @ x^T : contraction depth C = 128 fills the MXU
    wei = jnp.einsum('bqc,bkc->bqk', y, x,
                     preferred_element_type=jnp.float32)             # (bt, T, T) f32

    # merged causal + pad mask: single select on the (bt, T, T) scores
    row = lax.broadcasted_iota(jnp.int32, (T, T), 0)
    col = lax.broadcasted_iota(jnp.int32, (T, T), 1)
    keep = jnp.logical_and((col <= row)[None, :, :],                 # causal (keys <= query)
                           (pad_ref[...] > 0.5)[:, None, :])         # pad (key positions)
    wei = jnp.where(keep, wei, _NEG_LARGE)

    # softmax along keys, in f32; approximate reciprocal runs on the otherwise-idle EUP
    m = jnp.max(wei, axis=-1, keepdims=True)
    e = jnp.exp(wei - m)
    s = jnp.sum(e, axis=-1, keepdims=True)
    p = (e * pl.reciprocal(s, approx=True)).astype(jnp.bfloat16)     # (bt, T, T) bf16

    out = jnp.einsum('bqk,bkh->bqh', p, v,
                     preferred_element_type=jnp.float32)             # (bt, T, hs) f32

    # single store, directly in the layout the module returns (no wrapper transpose pass)
    o_ref[...] = out.astype(o_ref.dtype)


def causal_self_attention_head(embedding, pad_mask, wq, wk, wv, *, batch_block=BATCH_BLOCK):
    """embedding: (B, T, C) float32; pad_mask: (B, T) bool;
       wq/wk/wv: (C, head_size) float32 (already transposed vs. nn.Linear.weight).
       Returns (B, T, head_size) float32."""
    B, T, C = embedding.shape
    assert T == BLOCK_SIZE and C == EMBEDDING_DIM
    head_size = wq.shape[1]

    # fold the softmax scale into Wq and pre-contract Q/K: Wqk = (Wq*scale) @ Wk^T  (C, C).
    # q @ k^T * scale == x @ Wqk @ x^T, so the in-kernel score matmul gets a 128-deep contraction.
    scale = head_size ** (-0.5)
    w_qk = (wq * scale) @ wk.T                                       # (C, C) f32
    w_fused = jnp.concatenate([w_qk, wv], axis=1).astype(jnp.bfloat16)   # (C, C+hs) bf16

    # bf16 through HBM halves the dominant DMA traffic (memory-bound on v5e/v6e)
    x_bf16 = embedding.astype(jnp.bfloat16)
    pad_f = pad_mask.astype(jnp.float32)                             # (B, T)

    # block several batch elements per grid step; pad B up to a multiple of the block.
    # (for B > batch_block the grid is >= 2, so the "parallel" axis shards over v7x's 2 TCs)
    bt = min(batch_block, B)
    b_pad = ((B + bt - 1) // bt) * bt
    if b_pad != B:
        x_bf16 = jnp.pad(x_bf16, ((0, b_pad - B), (0, 0), (0, 0)))
        # padded batch rows keep all positions valid -> finite (discarded) outputs, no NaNs
        pad_f = jnp.pad(pad_f, ((0, b_pad - B), (0, 0)), constant_values=1.0)

    kernel = functools.partial(_attention_head_kernel, bt=bt, head_size=head_size)

    out = pl.pallas_call(
        kernel,
        out_shape=jax.ShapeDtypeStruct((b_pad, T, head_size), jnp.float32),
        grid_spec=pltpu.PrefetchScalarGridSpec(
            num_scalar_prefetch=0,
            grid=(b_pad // bt,),
            in_specs=[
                pl.BlockSpec((bt, T, C), lambda b: (b, 0, 0)),             # embedding block (bf16)
                pl.BlockSpec((bt, T), lambda b: (b, 0)),                   # pad mask block
                pl.BlockSpec((C, C + head_size), lambda b: (0, 0)),        # fused weights (shared)
            ],
            out_specs=pl.BlockSpec((bt, T, head_size), lambda b: (b, 0, 0)),
        ),
        compiler_params=pltpu.CompilerParams(
            dimension_semantics=("parallel",),              # batch axis shards across TCs on v7x
            vmem_limit_bytes=32 * 1024 * 1024),             # headroom above v5e's 16 MiB default
    )(x_bf16, pad_f, w_fused)

    return out[:B]                                          # already (B, T, head_size)


def _reference(embedding, pad_mask, wq, wk, wv):
    q = embedding @ wq
    k = embedding @ wk
    v = embedding @ wv
    wei = (q @ jnp.swapaxes(k, -2, -1)) * (k.shape[-1] ** -0.5)
    wei = jnp.where(pad_mask[:, None, :], wei, -jnp.inf)
    T = embedding.shape[1]
    causal = jnp.tril(jnp.ones((T, T), dtype=bool))
    wei = jnp.where(causal[None], wei, -jnp.inf)
    wei = jax.nn.softmax(wei, axis=-1)
    return wei @ v


if __name__ == "__main__":
    B, T, C, hs = 2, BLOCK_SIZE, EMBEDDING_DIM, HEAD_SIZE

    key = jax.random.PRNGKey(0)
    kx, kq, kk, kv = jax.random.split(key, 4)

    embedding = jax.random.normal(kx, (B, T, C), dtype=jnp.float32)
    # deterministic param init (uniform like nn.Linear default), stored as (C, head_size)
    bound = 1.0 / (C ** 0.5)
    wq = jax.random.uniform(kq, (C, hs), jnp.float32, -bound, bound)
    wk = jax.random.uniform(kk, (C, hs), jnp.float32, -bound, bound)
    wv = jax.random.uniform(kv, (C, hs), jnp.float32, -bound, bound)

    # pad mask: keep the first prefix of each sequence valid (ensures no all-masked rows)
    lengths = jnp.array([T, T // 2], dtype=jnp.int32)
    pad_mask = jnp.arange(T)[None, :] < lengths[:, None]             # (B, T) bool

    out = causal_self_attention_head(embedding, pad_mask, wq, wk, wv)
    out = jax.block_until_ready(out)

    ref = _reference(embedding, pad_mask, wq, wk, wv)
    assert out.shape == (B, T, hs)
    # tolerance loosened vs the f32 reference to cover bf16 MXU operands + approx reciprocal
    assert jnp.allclose(out, ref, atol=2e-2, rtol=2e-2), "mismatch vs reference"

    print("KERNEL_OK")
</pallas_src>

<mosaic_0001>
module attributes {stable_mosaic.version = 11 : i64} {
  func.func @_attention_head_kernel(%arg0: i32, %arg1: memref<2x128x128xbf16, #tpu.memory_space<vmem>>, %arg2: memref<2x128xf32, #tpu.memory_space<vmem>>, %arg3: memref<128x160xbf16, #tpu.memory_space<vmem>>, %arg4: memref<2x128x32xf32, #tpu.memory_space<vmem>>) attributes {dimension_semantics = [#tpu.dimension_semantics<parallel>], iteration_bounds = array<i64: 1>, scalar_prefetch = 0 : i64, scratch_operands = 0 : i64, tpu.core_type = #tpu.core_type<tc>, window_params = [{transform_indices = @transform_0, window_bounds = array<i64: 2, 128, 128>}, {transform_indices = @transform_1, window_bounds = array<i64: 2, 128>}, {pipeline_mode = #tpu.pipeline_mode<synchronous>, transform_indices = @transform_2, window_bounds = array<i64: 128, 160>}, {transform_indices = @transform_3, window_bounds = array<i64: 2, 128, 32>}]} {
    %c0 = arith.constant 0 : index
    %c0_0 = arith.constant 0 : index
    %c0_1 = arith.constant 0 : index
    %0 = vector.load %arg1[%c0, %c0_0, %c0_1] : memref<2x128x128xbf16, #tpu.memory_space<vmem>>, vector<2x128x128xbf16>
    %1 = vector.shape_cast %0 : vector<2x128x128xbf16> to vector<256x128xbf16>
    %c0_2 = arith.constant 0 : index
    %c0_3 = arith.constant 0 : index
    %2 = vector.load %arg3[%c0_2, %c0_3] : memref<128x160xbf16, #tpu.memory_space<vmem>>, vector<128x160xbf16>
    %cst = arith.constant dense<0.000000e+00> : vector<256x160xf32>
    %3 = tpu.matmul %1, %2, %cst {dimension_numbers = #tpu.dot_dimension_numbers<[1], [0], [0], [1], [0, 0, 1, 1], [], []>} : vector<256x128xbf16>, vector<128x160xbf16>, vector<256x160xf32> -> vector<256x160xf32>
    %4 = vector.extract_strided_slice %3 {offsets = [0, 0], sizes = [256, 128], strides = [1, 1]} : vector<256x160xf32> to vector<256x128xf32>
    %5 = vector.shape_cast %4 : vector<256x128xf32> to vector<2x128x128xf32>
    %6 = arith.truncf %5 : vector<2x128x128xf32> to vector<2x128x128xbf16>
    %7 = vector.extract_strided_slice %3 {offsets = [0, 128], sizes = [256, 32], strides = [1, 1]} : vector<256x160xf32> to vector<256x32xf32>
    %8 = vector.shape_cast %7 : vector<256x32xf32> to vector<2x128x32xf32>
    %9 = arith.truncf %8 : vector<2x128x32xf32> to vector<2x128x32xbf16>
    "tpu.trace_start"() <{level = 10 : i32, message = "bqc,bkc->bqk"}> : () -> ()
    %cst_4 = arith.constant dense<0.000000e+00> : vector<2x128x128xf32>
    %10 = tpu.matmul %6, %0, %cst_4 {dimension_numbers = #tpu.dot_dimension_numbers<[2], [2], [1], [1], [0, 0, 0, 1, 1, 1], [0], [0]>} : vector<2x128x128xbf16>, vector<2x128x128xbf16>, vector<2x128x128xf32> -> vector<2x128x128xf32>
    "tpu.trace_stop"() : () -> ()
    %11 = tpu.iota {dimensions = array<i32: 0>} : vector<128x128xi32>
    %12 = tpu.iota {dimensions = array<i32: 1>} : vector<128x128xi32>
    %13 = arith.cmpi sle, %12, %11 : vector<128x128xi32>
    %14 = vector.shape_cast %13 : vector<128x128xi1> to vector<1x128x128xi1>
    %c0_5 = arith.constant 0 : index
    %c0_6 = arith.constant 0 : index
    %15 = vector.load %arg2[%c0_5, %c0_6] : memref<2x128xf32, #tpu.memory_space<vmem>>, vector<2x128xf32>
    %cst_7 = arith.constant 5.000000e-01 : f32
    %16 = vector.broadcast %cst_7 : f32 to vector<2x128xf32>
    %17 = arith.cmpf ogt, %15, %16 : vector<2x128xf32>
    %18 = vector.shape_cast %17 : vector<2x128xi1> to vector<2x1x128xi1>
    %19 = vector.broadcast %14 : vector<1x128x128xi1> to vector<2x128x128xi1>
    %20 = vector.broadcast %18 : vector<2x1x128xi1> to vector<2x128x128xi1>
    %21 = arith.andi %19, %20 : vector<2x128x128xi1>
    %cst_8 = arith.constant -1.000000e+30 : f32
    %22 = vector.broadcast %cst_8 : f32 to vector<2x128x128xf32>
    %23 = arith.select %21, %10, %22 : vector<2x128x128xi1>, vector<2x128x128xf32>
    %cst_9 = arith.constant dense<0xFF800000> : vector<2x128xf32>
    %24 = vector.multi_reduction <maximumf>, %23, %cst_9 [2] : vector<2x128x128xf32> to vector<2x128xf32>
    %25 = vector.shape_cast %24 : vector<2x128xf32> to vector<2x128x1xf32>
    %26 = vector.broadcast %25 : vector<2x128x1xf32> to vector<2x128x128xf32>
    %27 = arith.subf %23, %26 : vector<2x128x128xf32>
    %28 = math.exp %27 : vector<2x128x128xf32>
    %cst_10 = arith.constant dense<0.000000e+00> : vector<2x128xf32>
    %29 = vector.multi_reduction <add>, %28, %cst_10 [2] : vector<2x128x128xf32> to vector<2x128xf32>
    %30 = vector.shape_cast %29 : vector<2x128xf32> to vector<2x128x1xf32>
    %31 = tpu.reciprocal %30 {approx = true} : vector<2x128x1xf32> -> vector<2x128x1xf32>
    %32 = vector.broadcast %31 : vector<2x128x1xf32> to vector<2x128x128xf32>
    %33 = arith.mulf %28, %32 : vector<2x128x128xf32>
    %34 = arith.truncf %33 : vector<2x128x128xf32> to vector<2x128x128xbf16>
    "tpu.trace_start"() <{level = 10 : i32, message = "bqk,bkh->bqh"}> : () -> ()
    %cst_11 = arith.constant dense<0.000000e+00> : vector<2x128x32xf32>
    %35 = tpu.matmul %34, %9, %cst_11 {dimension_numbers = #tpu.dot_dimension_numbers<[2], [1], [1], [2], [0, 0, 0, 1, 1, 2], [0], [0]>} : vector<2x128x128xbf16>, vector<2x128x32xbf16>, vector<2x128x32xf32> -> vector<2x128x32xf32>
    "tpu.trace_stop"() : () -> ()
    %c0_12 = arith.constant 0 : index
    %c0_13 = arith.constant 0 : index
    %c0_14 = arith.constant 0 : index
    %36 = vector.load %arg4[%c0_12, %c0_13, %c0_14] : memref<2x128x32xf32, #tpu.memory_space<vmem>>, vector<2x128x32xf32>
    tpu.vector_store %arg4[%c0_12, %c0_13, %c0_14], %35 {strides = array<i32>} : memref<2x128x32xf32, #tpu.memory_space<vmem>>, vector<2x128x32xf32>,
    return
  }
  func.func @transform_0(%arg0: i32) -> (i32, i32, i32) {
    %c0_i32 = arith.constant 0 : i32
    %c0_i32_0 = arith.constant 0 : i32
    %c0_i32_1 = arith.constant 0 : i32
    return %arg0, %c0_i32, %c0_i32_0 : i32, i32, i32
  }
  func.func @transform_1(%arg0: i32) -> (i32, i32) {
    %c0_i32 = arith.constant 0 : i32
    %c0_i32_0 = arith.constant 0 : i32
    return %arg0, %c0_i32 : i32, i32
  }
  func.func @transform_2(%arg0: i32) -> (i32, i32) {
    %c0_i32 = arith.constant 0 : i32
    %c0_i32_0 = arith.constant 0 : i32
    %c0_i32_1 = arith.constant 0 : i32
    return %c0_i32, %c0_i32_0 : i32, i32
  }
  func.func @transform_3(%arg0: i32) -> (i32, i32, i32) {
    %c0_i32 = arith.constant 0 : i32
    %c0_i32_0 = arith.constant 0 : i32
    %c0_i32_1 = arith.constant 0 : i32
    return %arg0, %c0_i32, %c0_i32_0 : i32, i32, i32
  }
}

</mosaic_0001>

<llo_original>
// kernel: tpu_custom_call.1
$region0: #{tpu_custom_call.1}
  #allocation0 [shape = 'u32[]', space=smem, size = 0x4, offset = 0x4, fixed_abs, tag = 'smem constant byte address 0x4 - core index']
  #allocation1 [shape = 'u32[144,128]{1,0:T(1,128)}', space=vmem, size = 0x12000, scoped, tag = 'internal scratch']
  %s0 = inlined_call_operand.vmem [shape: bf16[2,128,128], index: 0, kind: input, shape index: {}]
  %s1 = inlined_call_operand.vmem [shape: f32[2,128], index: 1, kind: input, shape index: {}]
  %s2 = inlined_call_operand.vmem [shape: bf16[128,160], index: 2, kind: input, shape index: {}]
  %s3 = inlined_call_operand.vmem [shape: f32[2,128,32], index: 3, kind: output, shape index: {}]
  %s4 = sld [smem:[#allocation0]]
  $region22: #{tpu_custom_call.1} parent=0
    _
  %s6 = ssub.s32 1, %s4
  %s7 = scalar_select 0, %s6, %s4
  // Predicated region
  $region2: #{tpu_custom_call.1} parent=0 // pred_check
    _
  $region3: #{tpu_custom_call.1} parent=0 // pred_check_branch
    %9 = sbr.rel (0) target = $region5
  $region4: #{tpu_custom_call.1} parent=0 // pred_region
    _
  $region5: #{tpu_custom_call.1} parent=0 // pred_fallthru
    _
  // Predicated region
  $region6: #{tpu_custom_call.1} parent=0 // pred_check
    _
  $region7: #{tpu_custom_call.1} parent=0 // pred_check_branch
    %11 = sbr.rel (0) target = $region9
  $region8: #{tpu_custom_call.1} parent=0 // pred_region
    _
  $region9: #{tpu_custom_call.1} parent=0 // pred_fallthru
    _
  // Predicated region
  $region10: #{tpu_custom_call.1} parent=0 // pred_check
    _
  $region11: #{tpu_custom_call.1} parent=0 // pred_check_branch
    %13 = sbr.rel (0) target = $region13
  $region12: #{tpu_custom_call.1} parent=0 // pred_region
    _
  $region13: #{tpu_custom_call.1} parent=0 // pred_fallthru
    _
  %v15 = vld [vmem:[%s0] sm:$0xf]
  %v16 = vld [vmem:[%s0 + $0x4] sm:$0xf]
  %v17 = vld [vmem:[%s0 + $0x8] sm:$0xf]
  %v18 = vld [vmem:[%s0 + $0xc] sm:$0xf]
  %v19 = vld [vmem:[%s0 + $0x10] sm:$0xf]
  %v20 = vld [vmem:[%s0 + $0x14] sm:$0xf]
  %v21 = vld [vmem:[%s0 + $0x18] sm:$0xf]
  %v22 = vld [vmem:[%s0 + $0x1c] sm:$0xf]
  %v23 = vld [vmem:[%s0 + $0x20] sm:$0xf]
  %v24 = vld [vmem:[%s0 + $0x24] sm:$0xf]
  %v25 = vld [vmem:[%s0 + $0x28] sm:$0xf]
  %v26 = vld [vmem:[%s0 + $0x2c] sm:$0xf]
  %v27 = vld [vmem:[%s0 + $0x30] sm:$0xf]
  %v28 = vld [vmem:[%s0 + $0x34] sm:$0xf]
  %v29 = vld [vmem:[%s0 + $0x38] sm:$0xf]
  %v30 = vld [vmem:[%s0 + $0x3c] sm:$0xf]
  %v31 = vld [vmem:[%s0 + $0x40] sm:$0xf]
  %v32 = vld [vmem:[%s0 + $0x44] sm:$0xf]
  %v33 = vld [vmem:[%s0 + $0x48] sm:$0xf]
  %v34 = vld [vmem:[%s0 + $0x4c] sm:$0xf]
  %v35 = vld [vmem:[%s0 + $0x50] sm:$0xf]
  %v36 = vld [vmem:[%s0 + $0x54] sm:$0xf]
  %v37 = vld [vmem:[%s0 + $0x58] sm:$0xf]
  %v38 = vld [vmem:[%s0 + $0x5c] sm:$0xf]
  %v39 = vld [vmem:[%s0 + $0x60] sm:$0xf]
  %v40 = vld [vmem:[%s0 + $0x64] sm:$0xf]
  %v41 = vld [vmem:[%s0 + $0x68] sm:$0xf]
  %v42 = vld [vmem:[%s0 + $0x6c] sm:$0xf]
  %v43 = vld [vmem:[%s0 + $0x70] sm:$0xf]
  %v44 = vld [vmem:[%s0 + $0x74] sm:$0xf]
  %v45 = vld [vmem:[%s0 + $0x78] sm:$0xf]
  %v46 = vld [vmem:[%s0 + $0x7c] sm:$0xf]
  %v47 = vld [vmem:[%s2] sm:$0xff]
  %v48 = vld [vmem:[%s2 + $0x8] sm:$0xff]
  %v49 = vld [vmem:[%s2 + $0x10] sm:$0xff]
  %v50 = vld [vmem:[%s2 + $0x18] sm:$0xff]
  %v51 = vld [vmem:[%s2 + $0x20] sm:$0xff]
  %v52 = vld [vmem:[%s2 + $0x28] sm:$0xff]
  %v53 = vld [vmem:[%s2 + $0x30] sm:$0xff]
  %v54 = vld [vmem:[%s2 + $0x38] sm:$0xff]
  %v55 = vld [vmem:[%s2 + $0x40] sm:$0xff]
  %v56 = vld [vmem:[%s2 + $0x48] sm:$0xff]
  %v57 = vld [vmem:[%s2 + $0x50] sm:$0xff]
  %v58 = vld [vmem:[%s2 + $0x58] sm:$0xff]
  %v59 = vld [vmem:[%s2 + $0x60] sm:$0xff]
  %v60 = vld [vmem:[%s2 + $0x68] sm:$0xff]
  %v61 = vld [vmem:[%s2 + $0x70] sm:$0xff]
  %v62 = vld [vmem:[%s2 + $0x78] sm:$0xff]
  %v95 = vunpack.c.l.b16 %v15
  %v96 = vunpack.c.l.b16 %v16
  %v97 = vunpack.c.l.b16 %v17
  %v98 = vunpack.c.l.b16 %v18
  %v99 = vunpack.c.l.b16 %v19
  %v100 = vunpack.c.l.b16 %v20
  %v101 = vunpack.c.l.b16 %v21
  %v102 = vunpack.c.l.b16 %v22
  %v103 = vunpack.c.l.b16 %v23
  %v104 = vunpack.c.l.b16 %v24
  %v105 = vunpack.c.l.b16 %v25
  %v106 = vunpack.c.l.b16 %v26
  %v107 = vunpack.c.l.b16 %v27
  %v108 = vunpack.c.l.b16 %v28
  %v109 = vunpack.c.l.b16 %v29
  %v110 = vunpack.c.l.b16 %v30
  %v111 = vunpack.c.l.b16 %v31
  %v112 = vunpack.c.l.b16 %v32
  %v113 = vunpack.c.l.b16 %v33
  %v114 = vunpack.c.l.b16 %v34
  %v115 = vunpack.c.l.b16 %v35
  %v116 = vunpack.c.l.b16 %v36
  %v117 = vunpack.c.l.b16 %v37
  %v118 = vunpack.c.l.b16 %v38
  %v119 = vunpack.c.l.b16 %v39
  %v120 = vunpack.c.l.b16 %v40
  %v121 = vunpack.c.l.b16 %v41
  %v122 = vunpack.c.l.b16 %v42
  %v123 = vunpack.c.l.b16 %v43
  %v124 = vunpack.c.l.b16 %v44
  %v125 = vunpack.c.l.b16 %v45
  %v126 = vunpack.c.l.b16 %v46
  %v127 = vpack.c.b16 %v96, %v95
  %v128 = vpack.c.b16 %v98, %v97
  %v129 = vpack.c.b16 %v100, %v99
  %v130 = vpack.c.b16 %v102, %v101
  %v131 = vpack.c.b16 %v104, %v103
  %v132 = vpack.c.b16 %v106, %v105
  %v133 = vpack.c.b16 %v108, %v107
  %v134 = vpack.c.b16 %v110, %v109
  %v135 = vpack.c.b16 %v112, %v111
  %v136 = vpack.c.b16 %v114, %v113
  %v137 = vpack.c.b16 %v116, %v115
  %v138 = vpack.c.b16 %v118, %v117
  %v139 = vpack.c.b16 %v120, %v119
  %v140 = vpack.c.b16 %v122, %v121
  %v141 = vpack.c.b16 %v124, %v123
  %v142 = vpack.c.b16 %v126, %v125
  %v175 = vunpack.c.l.b16 %v47
  %v176 = vunpack.c.h.b16 %v47
  %v177 = vunpack.c.l.b16 %v48
  %v178 = vunpack.c.h.b16 %v48
  %v179 = vunpack.c.l.b16 %v49
  %v180 = vunpack.c.h.b16 %v49
  %v181 = vunpack.c.l.b16 %v50
  %v182 = vunpack.c.h.b16 %v50
  %v183 = vunpack.c.l.b16 %v51
  %v184 = vunpack.c.h.b16 %v51
  %v185 = vunpack.c.l.b16 %v52
  %v186 = vunpack.c.h.b16 %v52
  %v187 = vunpack.c.l.b16 %v53
  %v188 = vunpack.c.h.b16 %v53
  %v189 = vunpack.c.l.b16 %v54
  %v190 = vunpack.c.h.b16 %v54
  %v191 = vunpack.c.l.b16 %v55
  %v192 = vunpack.c.h.b16 %v55
  %v193 = vunpack.c.l.b16 %v56
  %v194 = vunpack.c.h.b16 %v56
  %v195 = vunpack.c.l.b16 %v57
  %v196 = vunpack.c.h.b16 %v57
  %v197 = vunpack.c.l.b16 %v58
  %v198 = vunpack.c.h.b16 %v58
  %v199 = vunpack.c.l.b16 %v59
  %v200 = vunpack.c.h.b16 %v59
  %v201 = vunpack.c.l.b16 %v60
  %v202 = vunpack.c.h.b16 %v60
  %v203 = vunpack.c.l.b16 %v61
  %v204 = vunpack.c.h.b16 %v61
  %v205 = vunpack.c.l.b16 %v62
  %v206 = vunpack.c.h.b16 %v62
  %v207 = vpack.c.b16 %v177, %v175
  %v208 = vpack.c.b16 %v178, %v176
  %v209 = vpack.c.b16 %v181, %v179
  %v210 = vpack.c.b16 %v182, %v180
  %v211 = vpack.c.b16 %v185, %v183
  %v212 = vpack.c.b16 %v186, %v184
  %v213 = vpack.c.b16 %v189, %v187
  %v214 = vpack.c.b16 %v190, %v188
  %v215 = vpack.c.b16 %v193, %v191
  %v216 = vpack.c.b16 %v194, %v192
  %v217 = vpack.c.b16 %v197, %v195
  %v218 = vpack.c.b16 %v198, %v196
  %v219 = vpack.c.b16 %v201, %v199
  %v220 = vpack.c.b16 %v202, %v200
  %v221 = vpack.c.b16 %v205, %v203
  %v222 = vpack.c.b16 %v206, %v204
  %239 = vmatprep.subr.bf16.mxu0 %v222
  %240 = vmatpush1.bf16.msra.mxu0 %v221
  %241 = vmatprep.subr.bf16.mxu0 %v220
  %242 = vmatpush1.bf16.msra.mxu0 %v219
  %243 = vmatprep.subr.bf16.mxu0 %v218
  %244 = vmatpush1.bf16.msra.mxu0 %v217
  %245 = vmatprep.subr.bf16.mxu0 %v216
  %246 = vmatpush1.bf16.msra.mxu0 %v215
  %247 = vmatprep.subr.bf16.mxu0 %v214
  %248 = vmatpush1.bf16.msra.mxu0 %v213
  %249 = vmatprep.subr.bf16.mxu0 %v212
  %250 = vmatpush1.bf16.msra.mxu0 %v211
  %251 = vmatprep.subr.bf16.mxu0 %v210
  %252 = vmatpush1.bf16.msra.mxu0 %v209
  %253 = vmatprep.subr.bf16.mxu0 %v208
  %254 = vmatpush1.bf16.msra.mxu0 %v207
  %255 = vmatprep.subr.bf16.mxu0 0
  %256 = vmatpush2.bf16.msra.mxu0 0
  %257 = vmatprep.subr.bf16.mxu0 0
  %258 = vmatpush2.bf16.msra.mxu0 0
  %259 = vmatprep.subr.bf16.mxu0 0
  %260 = vmatpush2.bf16.msra.mxu0 0
  %261 = vmatprep.subr.bf16.mxu0 0
  %262 = vmatpush2.bf16.msra.mxu0 0
  %263 = vmatprep.subr.bf16.mxu0 0
  %264 = vmatpush2.bf16.msra.mxu0 0
  %265 = vmatprep.subr.bf16.mxu0 0
  %266 = vmatpush2.bf16.msra.mxu0 0
  %267 = vmatprep.subr.bf16.mxu0 0
  %268 = vmatpush2.bf16.msra.mxu0 0
  %269 = vmatprep.subr.bf16.mxu0 0
  %270 = vmatpush2.bf16.msra.mxu0 0
  %271 = vmatprep.mubr.bf16.mxu0 0
  %272 = vmatmul.mubr.bf16.gmra.mxu0 %v127
  %v273 = vpop.f32.mrf.mxu0
  %v274 = vadd.f32 0.0, %v273
  %v275 = vpop.f32.mrf.mxu0
  %v276 = vadd.f32 0.0, %v275
  %v277 = vpop.f32.mrf.mxu0
  %v278 = vadd.f32 0.0, %v277
  %v279 = vpop.f32.mrf.mxu0
  %v280 = vadd.f32 0.0, %v279
  %281 = vmatprep.mubr.bf16.mxu0 0
  %282 = vmatmul.mubr.bf16.gmra.mxu0 %v128
  %v283 = vpop.f32.mrf.mxu0
  %v284 = vadd.f32 0.0, %v283
  %v285 = vpop.f32.mrf.mxu0
  %v286 = vadd.f32 0.0, %v285
  %v287 = vpop.f32.mrf.mxu0
  %v288 = vadd.f32 0.0, %v287
  %v289 = vpop.f32.mrf.mxu0
  %v290 = vadd.f32 0.0, %v289
  %291 = vmatprep.mubr.bf16.mxu0 0
  %292 = vmatmul.mubr.bf16.gmra.mxu0 %v129
  %v293 = vpop.f32.mrf.mxu0
  %v294 = vadd.f32 0.0, %v293
  %v295 = vpop.f32.mrf.mxu0
  %v296 = vadd.f32 0.0, %v295
  %v297 = vpop.f32.mrf.mxu0
  %v298 = vadd.f32 0.0, %v297
  %v299 = vpop.f32.mrf.mxu0
  %v300 = vadd.f32 0.0, %v299
  %301 = vmatprep.mubr.bf16.mxu0 0
  %302 = vmatmul.mubr.bf16.gmra.mxu0 %v130
  %v303 = vpop.f32.mrf.mxu0
  %v304 = vadd.f32 0.0, %v303
  %v305 = vpop.f32.mrf.mxu0
  %v306 = vadd.f32 0.0, %v305
  %v307 = vpop.f32.mrf.mxu0
  %v308 = vadd.f32 0.0, %v307
  %v309 = vpop.f32.mrf.mxu0
  %v310 = vadd.f32 0.0, %v309
  %311 = vmatprep.mubr.bf16.mxu0 0
  %312 = vmatmul.mubr.bf16.gmra.mxu0 %v131
  %v313 = vpop.f32.mrf.mxu0
  %v314 = vadd.f32 0.0, %v313
  %v315 = vpop.f32.mrf.mxu0
  %v316 = vadd.f32 0.0, %v315
  %v317 = vpop.f32.mrf.mxu0
  %v318 = vadd.f32 0.0, %v317
  %v319 = vpop.f32.mrf.mxu0
  %v320 = vadd.f32 0.0, %v319
  %321 = vmatprep.mubr.bf16.mxu0 0
  %322 = vmatmul.mubr.bf16.gmra.mxu0 %v132
  %v323 = vpop.f32.mrf.mxu0
  %v324 = vadd.f32 0.0, %v323
  %v325 = vpop.f32.mrf.mxu0
  %v326 = vadd.f32 0.0, %v325
  %v327 = vpop.f32.mrf.mxu0
  %v328 = vadd.f32 0.0, %v327
  %v329 = vpop.f32.mrf.mxu0
  %v330 = vadd.f32 0.0, %v329
  %331 = vmatprep.mubr.bf16.mxu0 0
  %332 = vmatmul.mubr.bf16.gmra.mxu0 %v133
  %v333 = vpop.f32.mrf.mxu0
  %v334 = vadd.f32 0.0, %v333
  %v335 = vpop.f32.mrf.mxu0
  %v336 = vadd.f32 0.0, %v335
  %v337 = vpop.f32.mrf.mxu0
  %v338 = vadd.f32 0.0, %v337
  %v339 = vpop.f32.mrf.mxu0
  %v340 = vadd.f32 0.0, %v339
  %341 = vmatprep.mubr.bf16.mxu0 0
  %342 = vmatmul.mubr.bf16.gmra.mxu0 %v134
  %v343 = vpop.f32.mrf.mxu0
  %v344 = vadd.f32 0.0, %v343
  %v345 = vpop.f32.mrf.mxu0
  %v346 = vadd.f32 0.0, %v345
  %v347 = vpop.f32.mrf.mxu0
  %v348 = vadd.f32 0.0, %v347
  %v349 = vpop.f32.mrf.mxu0
  %v350 = vadd.f32 0.0, %v349
  %351 = vmatprep.mubr.bf16.mxu0 0
  %352 = vmatmul.mubr.bf16.gmra.mxu0 %v135
  %v353 = vpop.f32.mrf.mxu0
  %v354 = vadd.f32 0.0, %v353
  %v355 = vpop.f32.mrf.mxu0
  %v356 = vadd.f32 0.0, %v355
  %v357 = vpop.f32.mrf.mxu0
  %v358 = vadd.f32 0.0, %v357
  %v359 = vpop.f32.mrf.mxu0
  %v360 = vadd.f32 0.0, %v359
  %361 = vmatprep.mubr.bf16.mxu0 0
  %362 = vmatmul.mubr.bf16.gmra.mxu0 %v136
  %v363 = vpop.f32.mrf.mxu0
  %v364 = vadd.f32 0.0, %v363
  %v365 = vpop.f32.mrf.mxu0
  %v366 = vadd.f32 0.0, %v365
  %v367 = vpop.f32.mrf.mxu0
  %v368 = vadd.f32 0.0, %v367
  %v369 = vpop.f32.mrf.mxu0
  %v370 = vadd.f32 0.0, %v369
  %371 = vmatprep.mubr.bf16.mxu0 0
  %372 = vmatmul.mubr.bf16.gmra.mxu0 %v137
  %v373 = vpop.f32.mrf.mxu0
  %v374 = vadd.f32 0.0, %v373
  %v375 = vpop.f32.mrf.mxu0
  %v376 = vadd.f32 0.0, %v375
  %v377 = vpop.f32.mrf.mxu0
  %v378 = vadd.f32 0.0, %v377
  %v379 = vpop.f32.mrf.mxu0
  %v380 = vadd.f32 0.0, %v379
  %381 = vmatprep.mubr.bf16.mxu0 0
  %382 = vmatmul.mubr.bf16.gmra.mxu0 %v138
  %v383 = vpop.f32.mrf.mxu0
  %v384 = vadd.f32 0.0, %v383
  %v385 = vpop.f32.mrf.mxu0
  %v386 = vadd.f32 0.0, %v385
  %v387 = vpop.f32.mrf.mxu0
  %v388 = vadd.f32 0.0, %v387
  %v389 = vpop.f32.mrf.mxu0
  %v390 = vadd.f32 0.0, %v389
  %391 = vmatprep.mubr.bf16.mxu0 0
  %392 = vmatmul.mubr.bf16.gmra.mxu0 %v139
  %v393 = vpop.f32.mrf.mxu0
  %v394 = vadd.f32 0.0, %v393
  %v395 = vpop.f32.mrf.mxu0
  %v396 = vadd.f32 0.0, %v395
  %v397 = vpop.f32.mrf.mxu0
  %v398 = vadd.f32 0.0, %v397
  %v399 = vpop.f32.mrf.mxu0
  %v400 = vadd.f32 0.0, %v399
  %401 = vmatprep.mubr.bf16.mxu0 0
  %402 = vmatmul.mubr.bf16.gmra.mxu0 %v140
  %v403 = vpop.f32.mrf.mxu0
  %v404 = vadd.f32 0.0, %v403
  %v405 = vpop.f32.mrf.mxu0
  %v406 = vadd.f32 0.0, %v405
  %v407 = vpop.f32.mrf.mxu0
  %v408 = vadd.f32 0.0, %v407
  %v409 = vpop.f32.mrf.mxu0
  %v410 = vadd.f32 0.0, %v409
  %411 = vmatprep.mubr.bf16.mxu0 0
  %412 = vmatmul.mubr.bf16.gmra.mxu0 %v141
  %v413 = vpop.f32.mrf.mxu0
  %v414 = vadd.f32 0.0, %v413
  %v415 = vpop.f32.mrf.mxu0
  %v416 = vadd.f32 0.0, %v415
  %v417 = vpop.f32.mrf.mxu0
  %v418 = vadd.f32 0.0, %v417
  %v419 = vpop.f32.mrf.mxu0
  %v420 = vadd.f32 0.0, %v419
  %421 = vmatprep.mubr.bf16.mxu0 0
  %422 = vmatmul.mubr.bf16.gmra.mxu0 %v142
  %v423 = vpop.f32.mrf.mxu0
  %v424 = vadd.f32 0.0, %v423
  %v425 = vpop.f32.mrf.mxu0
  %v426 = vadd.f32 0.0, %v425
  %v427 = vpop.f32.mrf.mxu0
  %v428 = vadd.f32 0.0, %v427
  %v429 = vpop.f32.mrf.mxu0
  %v430 = vadd.f32 0.0, %v429
  %431 = vdwg.mxu0
  %v432 = vpack.c.bf16 %v278, %v274
  %v433 = vpack.c.bf16 %v288, %v284
  %v434 = vpack.c.bf16 %v298, %v294
  %v435 = vpack.c.bf16 %v308, %v304
  %v436 = vpack.c.bf16 %v318, %v314
  %v437 = vpack.c.bf16 %v328, %v324
  %v438 = vpack.c.bf16 %v338, %v334
  %v439 = vpack.c.bf16 %v348, %v344
  %v440 = vpack.c.bf16 %v358, %v354
  %v441 = vpack.c.bf16 %v368, %v364
  %v442 = vpack.c.bf16 %v378, %v374
  %v443 = vpack.c.bf16 %v388, %v384
  %v444 = vpack.c.bf16 %v398, %v394
  %v445 = vpack.c.bf16 %v408, %v404
  %v446 = vpack.c.bf16 %v418, %v414
  %v447 = vpack.c.bf16 %v428, %v424
  %v448 = vpack.c.bf16 %v280, %v276
  %v449 = vpack.c.bf16 %v290, %v286
  %v450 = vpack.c.bf16 %v300, %v296
  %v451 = vpack.c.bf16 %v310, %v306
  %v452 = vpack.c.bf16 %v320, %v316
  %v453 = vpack.c.bf16 %v330, %v326
  %v454 = vpack.c.bf16 %v340, %v336
  %v455 = vpack.c.bf16 %v350, %v346
  %v456 = vpack.c.bf16 %v360, %v356
  %v457 = vpack.c.bf16 %v370, %v366
  %v458 = vpack.c.bf16 %v380, %v376
  %v459 = vpack.c.bf16 %v390, %v386
  %v460 = vpack.c.bf16 %v400, %v396
  %v461 = vpack.c.bf16 %v410, %v406
  %v462 = vpack.c.bf16 %v420, %v416
  %v463 = vpack.c.bf16 %v430, %v426
  %464 = vmatprep.subr.bf16.mxu0 0
  %465 = vmatpush1.bf16.xpose.msra.mxu0 %v134
  %466 = vmatprep.subr.bf16.mxu0 0
  %467 = vmatpush1.bf16.xpose.msra.mxu0 %v133
  %468 = vmatprep.subr.bf16.mxu0 0
  %469 = vmatpush1.bf16.xpose.msra.mxu0 %v132
  %470 = vmatprep.subr.bf16.mxu0 0
  %471 = vmatpush1.bf16.xpose.msra.mxu0 %v131
  %472 = vmatprep.subr.bf16.mxu0 0
  %473 = vmatpush1.bf16.xpose.msra.mxu0 %v130
  %474 = vmatprep.subr.bf16.mxu0 0
  %475 = vmatpush1.bf16.xpose.msra.mxu0 %v129
  %476 = vmatprep.subr.bf16.mxu0 0
  %477 = vmatpush1.bf16.xpose.msra.mxu0 %v128
  %478 = vmatprep.subr.bf16.mxu0 0
  %479 = vmatpush1.bf16.xpose.msra.mxu0 %v127
  %480 = vmatprep.subr.bf16.mxu0 0
  %481 = vmatpush2.bf16.xpose.msra.mxu0 0
  %482 = vmatprep.subr.bf16.mxu0 0
  %483 = vmatpush2.bf16.xpose.msra.mxu0 0
  %484 = vmatprep.subr.bf16.mxu0 0
  %485 = vmatpush2.bf16.xpose.msra.mxu0 0
  %486 = vmatprep.subr.bf16.mxu0 0
  %487 = vmatpush2.bf16.xpose.msra.mxu0 0
  %488 = vmatprep.subr.bf16.mxu0 0
  %489 = vmatpush2.bf16.xpose.msra.mxu0 0
  %490 = vmatprep.subr.bf16.mxu0 0
  %491 = vmatpush2.bf16.xpose.msra.mxu0 0
  %492 = vmatprep.subr.bf16.mxu0 0
  %493 = vmatpush2.bf16.xpose.msra.mxu0 0
  %494 = vmatprep.subr.bf16.mxu0 0
  %495 = vmatpush2.bf16.xpose.msra.mxu0 0
  %496 = vmatprep.mubr.bf16.mxu0 0
  %497 = vmatmul.mubr.bf16.gmra.mxu0 %v432
  %v498 = vpop.f32.mrf.mxu0
  %v499 = vadd.f32 0.0, %v498
  %v500 = vpop.f32.mrf.mxu0
  %v501 = vpop.f32.mrf.mxu0
  %v502 = vadd.f32 0.0, %v501
  %v503 = vpop.f32.mrf.mxu0
  %504 = vmatprep.mubr.bf16.mxu0 0
  %505 = vmatmul.mubr.bf16.gmra.mxu0 %v433
  %v506 = vpop.f32.mrf.mxu0
  %v507 = vadd.f32 0.0, %v506
  %v508 = vpop.f32.mrf.mxu0
  %v509 = vpop.f32.mrf.mxu0
  %v510 = vadd.f32 0.0, %v509
  %v511 = vpop.f32.mrf.mxu0
  %512 = vmatprep.mubr.bf16.mxu0 0
  %513 = vmatmul.mubr.bf16.gmra.mxu0 %v434
  %v514 = vpop.f32.mrf.mxu0
  %v515 = vadd.f32 0.0, %v514
  %v516 = vpop.f32.mrf.mxu0
  %v517 = vpop.f32.mrf.mxu0
  %v518 = vadd.f32 0.0, %v517
  %v519 = vpop.f32.mrf.mxu0
  %520 = vmatprep.mubr.bf16.mxu0 0
  %521 = vmatmul.mubr.bf16.gmra.mxu0 %v435
  %v522 = vpop.f32.mrf.mxu0
  %v523 = vadd.f32 0.0, %v522
  %v524 = vpop.f32.mrf.mxu0
  %v525 = vpop.f32.mrf.mxu0
  %v526 = vadd.f32 0.0, %v525
  %v527 = vpop.f32.mrf.mxu0
  %528 = vmatprep.mubr.bf16.mxu0 0
  %529 = vmatmul.mubr.bf16.gmra.mxu0 %v436
  %v530 = vpop.f32.mrf.mxu0
  %v531 = vadd.f32 0.0, %v530
  %v532 = vpop.f32.mrf.mxu0
  %v533 = vpop.f32.mrf.mxu0
  %v534 = vadd.f32 0.0, %v533
  %v535 = vpop.f32.mrf.mxu0
  %536 = vmatprep.mubr.bf16.mxu0 0
  %537 = vmatmul.mubr.bf16.gmra.mxu0 %v437
  %v538 = vpop.f32.mrf.mxu0
  %v539 = vadd.f32 0.0, %v538
  %v540 = vpop.f32.mrf.mxu0
  %v541 = vpop.f32.mrf.mxu0
  %v542 = vadd.f32 0.0, %v541
  %v543 = vpop.f32.mrf.mxu0
  %544 = vmatprep.mubr.bf16.mxu0 0
  %545 = vmatmul.mubr.bf16.gmra.mxu0 %v438
  %v546 = vpop.f32.mrf.mxu0
  %v547 = vadd.f32 0.0, %v546
  %v548 = vpop.f32.mrf.mxu0
  %v549 = vpop.f32.mrf.mxu0
  %v550 = vadd.f32 0.0, %v549
  %v551 = vpop.f32.mrf.mxu0
  %552 = vmatprep.mubr.bf16.mxu0 0
  %553 = vmatmul.mubr.bf16.gmra.mxu0 %v439
  %v554 = vpop.f32.mrf.mxu0
  %v555 = vadd.f32 0.0, %v554
  %v556 = vpop.f32.mrf.mxu0
  %v557 = vpop.f32.mrf.mxu0
  %v558 = vadd.f32 0.0, %v557
  %v559 = vpop.f32.mrf.mxu0
  %560 = vdwg.mxu0
  %561 = vmatprep.subr.bf16.mxu0 0
  %562 = vmatpush1.bf16.xpose.msra.mxu0 %v142
  %563 = vmatprep.subr.bf16.mxu0 0
  %564 = vmatpush1.bf16.xpose.msra.mxu0 %v141
  %565 = vmatprep.subr.bf16.mxu0 0
  %566 = vmatpush1.bf16.xpose.msra.mxu0 %v140
  %567 = vmatprep.subr.bf16.mxu0 0
  %568 = vmatpush1.bf16.xpose.msra.mxu0 %v139
  %569 = vmatprep.subr.bf16.mxu0 0
  %570 = vmatpush1.bf16.xpose.msra.mxu0 %v138
  %571 = vmatprep.subr.bf16.mxu0 0
  %572 = vmatpush1.bf16.xpose.msra.mxu0 %v137
  %573 = vmatprep.subr.bf16.mxu0 0
  %574 = vmatpush1.bf16.xpose.msra.mxu0 %v136
  %575 = vmatprep.subr.bf16.mxu0 0
  %576 = vmatpush1.bf16.xpose.msra.mxu0 %v135
  %577 = vmatprep.subr.bf16.mxu0 0
  %578 = vmatpush2.bf16.xpose.msra.mxu0 0
  %579 = vmatprep.subr.bf16.mxu0 0
  %580 = vmatpush2.bf16.xpose.msra.mxu0 0
  %581 = vmatprep.subr.bf16.mxu0 0
  %582 = vmatpush2.bf16.xpose.msra.mxu0 0
  %583 = vmatprep.subr.bf16.mxu0 0
  %584 = vmatpush2.bf16.xpose.msra.mxu0 0
  %585 = vmatprep.subr.bf16.mxu0 0
  %586 = vmatpush2.bf16.xpose.msra.mxu0 0
  %587 = vmatprep.subr.bf16.mxu0 0
  %588 = vmatpush2.bf16.xpose.msra.mxu0 0
  %589 = vmatprep.subr.bf16.mxu0 0
  %590 = vmatpush2.bf16.xpose.msra.mxu0 0
  %591 = vmatprep.subr.bf16.mxu0 0
  %592 = vmatpush2.bf16.xpose.msra.mxu0 0
  %593 = vmatprep.mubr.bf16.mxu0 0
  %594 = vmatmul.mubr.bf16.gmra.mxu0 %v440
  %v595 = vpop.f32.mrf.mxu0
  %v596 = vadd.f32 0.0, %v595
  %v597 = vpop.f32.mrf.mxu0
  %v598 = vpop.f32.mrf.mxu0
  %v599 = vadd.f32 0.0, %v598
  %v600 = vpop.f32.mrf.mxu0
  %601 = vmatprep.mubr.bf16.mxu0 0
  %602 = vmatmul.mubr.bf16.gmra.mxu0 %v441
  %v603 = vpop.f32.mrf.mxu0
  %v604 = vadd.f32 0.0, %v603
  %v605 = vpop.f32.mrf.mxu0
  %v606 = vpop.f32.mrf.mxu0
  %v607 = vadd.f32 0.0, %v606
  %v608 = vpop.f32.mrf.mxu0
  %609 = vmatprep.mubr.bf16.mxu0 0
  %610 = vmatmul.mubr.bf16.gmra.mxu0 %v442
  %v611 = vpop.f32.mrf.mxu0
  %v612 = vadd.f32 0.0, %v611
  %v613 = vpop.f32.mrf.mxu0
  %v614 = vpop.f32.mrf.mxu0
  %v615 = vadd.f32 0.0, %v614
  %v616 = vpop.f32.mrf.mxu0
  %617 = vmatprep.mubr.bf16.mxu0 0
  %618 = vmatmul.mubr.bf16.gmra.mxu0 %v443
  %v619 = vpop.f32.mrf.mxu0
  %v620 = vadd.f32 0.0, %v619
  %v621 = vpop.f32.mrf.mxu0
  %v622 = vpop.f32.mrf.mxu0
  %v623 = vadd.f32 0.0, %v622
  %v624 = vpop.f32.mrf.mxu0
  %625 = vmatprep.mubr.bf16.mxu0 0
  %626 = vmatmul.mubr.bf16.gmra.mxu0 %v444
  %v627 = vpop.f32.mrf.mxu0
  %v628 = vadd.f32 0.0, %v627
  %v629 = vpop.f32.mrf.mxu0
  %v630 = vpop.f32.mrf.mxu0
  %v631 = vadd.f32 0.0, %v630
  %v632 = vpop.f32.mrf.mxu0
  %633 = vmatprep.mubr.bf16.mxu0 0
  %634 = vmatmul.mubr.bf16.gmra.mxu0 %v445
  %v635 = vpop.f32.mrf.mxu0
  %v636 = vadd.f32 0.0, %v635
  %v637 = vpop.f32.mrf.mxu0
  %v638 = vpop.f32.mrf.mxu0
  %v639 = vadd.f32 0.0, %v638
  %v640 = vpop.f32.mrf.mxu0
  %641 = vmatprep.mubr.bf16.mxu0 0
  %642 = vmatmul.mubr.bf16.gmra.mxu0 %v446
  %v643 = vpop.f32.mrf.mxu0
  %v644 = vadd.f32 0.0, %v643
  %v645 = vpop.f32.mrf.mxu0
  %v646 = vpop.f32.mrf.mxu0
  %v647 = vadd.f32 0.0, %v646
  %v648 = vpop.f32.mrf.mxu0
  %649 = vmatprep.mubr.bf16.mxu0 0
  %650 = vmatmul.mubr.bf16.gmra.mxu0 %v447
  %v651 = vpop.f32.mrf.mxu0
  %v652 = vadd.f32 0.0, %v651
  %v653 = vpop.f32.mrf.mxu0
  %v654 = vpop.f32.mrf.mxu0
  %v655 = vadd.f32 0.0, %v654
  %v656 = vpop.f32.mrf.mxu0
  %657 = vdwg.mxu0
  %v658 = vlaneseq
  %v659 = vshrl.u32 %v658, 7
  %v660 = vadd.s32 %v659, 8
  %v661 = vadd.s32 %v659, 16
  %v662 = vadd.s32 %v659, 24
  %v663 = vadd.s32 %v659, 32
  %v664 = vadd.s32 %v659, 40
  %v665 = vadd.s32 %v659, 48
  %v666 = vadd.s32 %v659, 56
  %v667 = vadd.s32 %v659, 64
  %v668 = vadd.s32 %v659, 72
  %v669 = vadd.s32 %v659, 80
  %v670 = vadd.s32 %v659, 88
  %v671 = vadd.s32 %v659, 96
  %v672 = vadd.s32 %v659, 104
  %v673 = vadd.s32 %v659, 112
  %v674 = vadd.s32 %v659, 120
  %v675 = vlaneseq
  %v676 = vand.u32 %v675, 127
  %vm677 = vcmp.le.s32.totalorder %v676, %v659
  %vm678 = vcmp.le.s32.totalorder %v676, %v660
  %vm679 = vcmp.le.s32.totalorder %v676, %v661
  %vm680 = vcmp.le.s32.totalorder %v676, %v662
  %vm681 = vcmp.le.s32.totalorder %v676, %v663
  %vm682 = vcmp.le.s32.totalorder %v676, %v664
  %vm683 = vcmp.le.s32.totalorder %v676, %v665
  %vm684 = vcmp.le.s32.totalorder %v676, %v666
  %vm685 = vcmp.le.s32.totalorder %v676, %v667
  %vm686 = vcmp.le.s32.totalorder %v676, %v668
  %vm687 = vcmp.le.s32.totalorder %v676, %v669
  %vm688 = vcmp.le.s32.totalorder %v676, %v670
  %vm689 = vcmp.le.s32.totalorder %v676, %v671
  %vm690 = vcmp.le.s32.totalorder %v676, %v672
  %vm691 = vcmp.le.s32.totalorder %v676, %v673
  %vm692 = vcmp.le.s32.totalorder %v676, %v674
  %v693 = vld [vmem:[%s1] sm:$0x3]
  %vm694 = vcmp.gt.f32.partialorder %v693, 0.5
  %v695 = vsel %vm694, 1, 0
  %v697 = vunpack.c.l.s4 1966171168
  %v698 = vunpack.c.0.s8 %v697
  %v699 = vlaneseq
  %v700 = vshrl.u32 %v699, 7
  %v701 = vsub.s32 %v698, %v700
  %v702 = vrot.slane %v695, %v701
  %v703 = vcombine.high %v702, %v702
  %v705 = vunpack.c.l.s4 1966171168
  %v706 = vunpack.c.0.s8 %v705
  %v707 = vlaneseq
  %v708 = vshrl.u32 %v707, 7
  %v709 = vsub.s32 %v706, %v708
  %v710 = vrot.slane %v702, %v709
  %v712 = vunpack.c.l.s4 1966171168
  %v713 = vunpack.c.0.s8 %v712
  %v714 = vlaneseq
  %v715 = vshrl.u32 %v714, 7
  %v716 = vsub.s32 %v713, %v715
  %v717 = vrot.slane %v703, %v716
  %vm718 = vcmp.ne.s32.totalorder %v710, 0
  %vm719 = vcmp.ne.s32.totalorder %v717, 0
  %v720 = vsel %vm677, 1, 0
  %v721 = vsel %vm678, 1, 0
  %v722 = vsel %vm679, 1, 0
  %v723 = vsel %vm680, 1, 0
  %v724 = vsel %vm681, 1, 0
  %v725 = vsel %vm682, 1, 0
  %v726 = vsel %vm683, 1, 0
  %v727 = vsel %vm684, 1, 0
  %v728 = vsel %vm685, 1, 0
  %v729 = vsel %vm686, 1, 0
  %v730 = vsel %vm687, 1, 0
  %v731 = vsel %vm688, 1, 0
  %v732 = vsel %vm689, 1, 0
  %v733 = vsel %vm690, 1, 0
  %v734 = vsel %vm691, 1, 0
  %v735 = vsel %vm692, 1, 0
  %vm736 = vcmp.eq.s32.totalorder %v720, 1
  %vm737 = vcmp.eq.s32.totalorder %v721, 1
  %vm738 = vcmp.eq.s32.totalorder %v722, 1
  %vm739 = vcmp.eq.s32.totalorder %v723, 1
  %vm740 = vcmp.eq.s32.totalorder %v724, 1
  %vm741 = vcmp.eq.s32.totalorder %v725, 1
  %vm742 = vcmp.eq.s32.totalorder %v726, 1
  %vm743 = vcmp.eq.s32.totalorder %v727, 1
  %vm744 = vcmp.eq.s32.totalorder %v728, 1
  %vm745 = vcmp.eq.s32.totalorder %v729, 1
  %vm746 = vcmp.eq.s32.totalorder %v730, 1
  %vm747 = vcmp.eq.s32.totalorder %v731, 1
  %vm748 = vcmp.eq.s32.totalorder %v732, 1
  %vm749 = vcmp.eq.s32.totalorder %v733, 1
  %vm750 = vcmp.eq.s32.totalorder %v734, 1
  %vm751 = vcmp.eq.s32.totalorder %v735, 1
  %v752 = vsel %vm718, 1, 0
  %v753 = vsel %vm719, 1, 0
  %v754 = vlaneseq
  %v755 = vshrl.u32 %v754, 7
  %v756 = vsub.s32 0, %v755
  %v757 = vrot.slane %v752, %v756
  %v758 = vlaneseq
  %v759 = vshrl.u32 %v758, 7
  %v760 = vsub.s32 0, %v759
  %v761 = vrot.slane %v753, %v760
  %vm762 = vcmp.eq.s32.totalorder %v757, 1
  %vm763 = vcmp.eq.s32.totalorder %v761, 1
  %vm764 = vmand %vm736, %vm762
  %vm765 = vmand %vm737, %vm762
  %vm766 = vmand %vm738, %vm762
  %vm767 = vmand %vm739, %vm762
  %vm768 = vmand %vm740, %vm762
  %vm769 = vmand %vm741, %vm762
  %vm770 = vmand %vm742, %vm762
  %vm771 = vmand %vm743, %vm762
  %vm772 = vmand %vm744, %vm762
  %vm773 = vmand %vm745, %vm762
  %vm774 = vmand %vm746, %vm762
  %vm775 = vmand %vm747, %vm762
  %vm776 = vmand %vm748, %vm762
  %vm777 = vmand %vm749, %vm762
  %vm778 = vmand %vm750, %vm762
  %vm779 = vmand %vm751, %vm762
  %vm780 = vmand %vm736, %vm763
  %vm781 = vmand %vm737, %vm763
  %vm782 = vmand %vm738, %vm763
  %vm783 = vmand %vm739, %vm763
  %vm784 = vmand %vm740, %vm763
  %vm785 = vmand %vm741, %vm763
  %vm786 = vmand %vm742, %vm763
  %vm787 = vmand %vm743, %vm763
  %vm788 = vmand %vm744, %vm763
  %vm789 = vmand %vm745, %vm763
  %vm790 = vmand %vm746, %vm763
  %vm791 = vmand %vm747, %vm763
  %vm792 = vmand %vm748, %vm763
  %vm793 = vmand %vm749, %vm763
  %vm794 = vmand %vm750, %vm763
  %vm795 = vmand %vm751, %vm763
  %v796 = vsel %vm764, %v499, -1e+30
  %v797 = vsel %vm765, %v502, -1e+30
  %v798 = vsel %vm766, %v507, -1e+30
  %v799 = vsel %vm767, %v510, -1e+30
  %v800 = vsel %vm768, %v515, -1e+30
  %v801 = vsel %vm769, %v518, -1e+30
  %v802 = vsel %vm770, %v523, -1e+30
  %v803 = vsel %vm771, %v526, -1e+30
  %v804 = vsel %vm772, %v531, -1e+30
  %v805 = vsel %vm773, %v534, -1e+30
  %v806 = vsel %vm774, %v539, -1e+30
  %v807 = vsel %vm775, %v542, -1e+30
  %v808 = vsel %vm776, %v547, -1e+30
  %v809 = vsel %vm777, %v550, -1e+30
  %v810 = vsel %vm778, %v555, -1e+30
  %v811 = vsel %vm779, %v558, -1e+30
  %v812 = vsel %vm780, %v596, -1e+30
  %v813 = vsel %vm781, %v599, -1e+30
  %v814 = vsel %vm782, %v604, -1e+30
  %v815 = vsel %vm783, %v607, -1e+30
  %v816 = vsel %vm784, %v612, -1e+30
  %v817 = vsel %vm785, %v615, -1e+30
  %v818 = vsel %vm786, %v620, -1e+30
  %v819 = vsel %vm787, %v623, -1e+30
  %v820 = vsel %vm788, %v628, -1e+30
  %v821 = vsel %vm789, %v631, -1e+30
  %v822 = vsel %vm790, %v636, -1e+30
  %v823 = vsel %vm791, %v639, -1e+30
  %v824 = vsel %vm792, %v644, -1e+30
  %v825 = vsel %vm793, %v647, -1e+30
  %v826 = vsel %vm794, %v652, -1e+30
  %v827 = vsel %vm795, %v655, -1e+30
  %828 = vmax.xlane.f32.xlu0 %v796
  %v829 = vpop.xlane.xlu0 %828
  %830 = vmax.xlane.f32.xlu0 %v797
  %v831 = vpop.xlane.xlu0 %830
  %832 = vmax.xlane.f32.xlu0 %v798
  %v833 = vpop.xlane.xlu0 %832
  %834 = vmax.xlane.f32.xlu0 %v799
  %v835 = vpop.xlane.xlu0 %834
  %836 = vmax.xlane.f32.xlu0 %v800
  %v837 = vpop.xlane.xlu0 %836
  %838 = vmax.xlane.f32.xlu0 %v801
  %v839 = vpop.xlane.xlu0 %838
  %840 = vmax.xlane.f32.xlu0 %v802
  %v841 = vpop.xlane.xlu0 %840
  %842 = vmax.xlane.f32.xlu0 %v803
  %v843 = vpop.xlane.xlu0 %842
  %844 = vmax.xlane.f32.xlu0 %v804
  %v845 = vpop.xlane.xlu0 %844
  %846 = vmax.xlane.f32.xlu0 %v805
  %v847 = vpop.xlane.xlu0 %846
  %848 = vmax.xlane.f32.xlu0 %v806
  %v849 = vpop.xlane.xlu0 %848
  %850 = vmax.xlane.f32.xlu0 %v807
  %v851 = vpop.xlane.xlu0 %850
  %852 = vmax.xlane.f32.xlu0 %v808
  %v853 = vpop.xlane.xlu0 %852
  %854 = vmax.xlane.f32.xlu0 %v809
  %v855 = vpop.xlane.xlu0 %854
  %856 = vmax.xlane.f32.xlu0 %v810
  %v857 = vpop.xlane.xlu0 %856
  %858 = vmax.xlane.f32.xlu0 %v811
  %v859 = vpop.xlane.xlu0 %858
  %860 = vmax.xlane.f32.xlu0 %v812
  %v861 = vpop.xlane.xlu0 %860
  %862 = vmax.xlane.f32.xlu0 %v813
  %v863 = vpop.xlane.xlu0 %862
  %864 = vmax.xlane.f32.xlu0 %v814
  %v865 = vpop.xlane.xlu0 %864
  %866 = vmax.xlane.f32.xlu0 %v815
  %v867 = vpop.xlane.xlu0 %866
  %868 = vmax.xlane.f32.xlu0 %v816
  %v869 = vpop.xlane.xlu0 %868
  %870 = vmax.xlane.f32.xlu0 %v817
  %v871 = vpop.xlane.xlu0 %870
  %872 = vmax.xlane.f32.xlu0 %v818
  %v873 = vpop.xlane.xlu0 %872
  %874 = vmax.xlane.f32.xlu0 %v819
  %v875 = vpop.xlane.xlu0 %874
  %876 = vmax.xlane.f32.xlu0 %v820
  %v877 = vpop.xlane.xlu0 %876
  %878 = vmax.xlane.f32.xlu0 %v821
  %v879 = vpop.xlane.xlu0 %878
  %880 = vmax.xlane.f32.xlu0 %v822
  %v881 = vpop.xlane.xlu0 %880
  %882 = vmax.xlane.f32.xlu0 %v823
  %v883 = vpop.xlane.xlu0 %882
  %884 = vmax.xlane.f32.xlu0 %v824
  %v885 = vpop.xlane.xlu0 %884
  %886 = vmax.xlane.f32.xlu0 %v825
  %v887 = vpop.xlane.xlu0 %886
  %888 = vmax.xlane.f32.xlu0 %v826
  %v889 = vpop.xlane.xlu0 %888
  %890 = vmax.xlane.f32.xlu0 %v827
  %v891 = vpop.xlane.xlu0 %890
  %v892 = vsub.f32 %v796, %v829
  %v893 = vsub.f32 %v797, %v831
  %v894 = vsub.f32 %v798, %v833
  %v895 = vsub.f32 %v799, %v835
  %v896 = vsub.f32 %v800, %v837
  %v897 = vsub.f32 %v801, %v839
  %v898 = vsub.f32 %v802, %v841
  %v899 = vsub.f32 %v803, %v843
  %v900 = vsub.f32 %v804, %v845
  %v901 = vsub.f32 %v805, %v847
  %v902 = vsub.f32 %v806, %v849
  %v903 = vsub.f32 %v807, %v851
  %v904 = vsub.f32 %v808, %v853
  %v905 = vsub.f32 %v809, %v855
  %v906 = vsub.f32 %v810, %v857
  %v907 = vsub.f32 %v811, %v859
  %v908 = vsub.f32 %v812, %v861
  %v909 = vsub.f32 %v813, %v863
  %v910 = vsub.f32 %v814, %v865
  %v911 = vsub.f32 %v815, %v867
  %v912 = vsub.f32 %v816, %v869
  %v913 = vsub.f32 %v817, %v871
  %v914 = vsub.f32 %v818, %v873
  %v915 = vsub.f32 %v819, %v875
  %v916 = vsub.f32 %v820, %v877
  %v917 = vsub.f32 %v821, %v879
  %v918 = vsub.f32 %v822, %v881
  %v919 = vsub.f32 %v823, %v883
  %v920 = vsub.f32 %v824, %v885
  %v921 = vsub.f32 %v825, %v887
  %v922 = vsub.f32 %v826, %v889
  %v923 = vsub.f32 %v827, %v891
  %v924 = vmul.f32 %v892, 1.442695
  %v925 = vpow.pop %v924
  %v926 = vmul.f32 %v893, 1.442695
  %v927 = vpow.pop %v926
  %v928 = vmul.f32 %v894, 1.442695
  %v929 = vpow.pop %v928
  %v930 = vmul.f32 %v895, 1.442695
  %v931 = vpow.pop %v930
  %v932 = vmul.f32 %v896, 1.442695
  %v933 = vpow.pop %v932
  %v934 = vmul.f32 %v897, 1.442695
  %v935 = vpow.pop %v934
  %v936 = vmul.f32 %v898, 1.442695
  %v937 = vpow.pop %v936
  %v938 = vmul.f32 %v899, 1.442695
  %v939 = vpow.pop %v938
  %v940 = vmul.f32 %v900, 1.442695
  %v941 = vpow.pop %v940
  %v942 = vmul.f32 %v901, 1.442695
  %v943 = vpow.pop %v942
  %v944 = vmul.f32 %v902, 1.442695
  %v945 = vpow.pop %v944
  %v946 = vmul.f32 %v903, 1.442695
  %v947 = vpow.pop %v946
  %v948 = vmul.f32 %v904, 1.442695
  %v949 = vpow.pop %v948
  %v950 = vmul.f32 %v905, 1.442695
  %v951 = vpow.pop %v950
  %v952 = vmul.f32 %v906, 1.442695
  %v953 = vpow.pop %v952
  %v954 = vmul.f32 %v907, 1.442695
  %v955 = vpow.pop %v954
  %v956 = vmul.f32 %v908, 1.442695
  %v957 = vpow.pop %v956
  %v958 = vmul.f32 %v909, 1.442695
  %v959 = vpow.pop %v958
  %v960 = vmul.f32 %v910, 1.442695
  %v961 = vpow.pop %v960
  %v962 = vmul.f32 %v911, 1.442695
  %v963 = vpow.pop %v962
  %v964 = vmul.f32 %v912, 1.442695
  %v965 = vpow.pop %v964
  %v966 = vmul.f32 %v913, 1.442695
  %v967 = vpow.pop %v966
  %v968 = vmul.f32 %v914, 1.442695
  %v969 = vpow.pop %v968
  %v970 = vmul.f32 %v915, 1.442695
  %v971 = vpow.pop %v970
  %v972 = vmul.f32 %v916, 1.442695
  %v973 = vpow.pop %v972
  %v974 = vmul.f32 %v917, 1.442695
  %v975 = vpow.pop %v974
  %v976 = vmul.f32 %v918, 1.442695
  %v977 = vpow.pop %v976
  %v978 = vmul.f32 %v919, 1.442695
  %v979 = vpow.pop %v978
  %v980 = vmul.f32 %v920, 1.442695
  %v981 = vpow.pop %v980
  %v982 = vmul.f32 %v921, 1.442695
  %v983 = vpow.pop %v982
  %v984 = vmul.f32 %v922, 1.442695
  %v985 = vpow.pop %v984
  %v986 = vmul.f32 %v923, 1.442695
  %v987 = vpow.pop %v986
  %988 = vadd.xlane.f32.xlu0 %v925
  %v989 = vpop.xlane.xlu0 %988
  %990 = vadd.xlane.f32.xlu0 %v927
  %v991 = vpop.xlane.xlu0 %990
  %992 = vadd.xlane.f32.xlu0 %v929
  %v993 = vpop.xlane.xlu0 %992
  %994 = vadd.xlane.f32.xlu0 %v931
  %v995 = vpop.xlane.xlu0 %994
  %996 = vadd.xlane.f32.xlu0 %v933
  %v997 = vpop.xlane.xlu0 %996
  %998 = vadd.xlane.f32.xlu0 %v935
  %v999 = vpop.xlane.xlu0 %998
  %1000 = vadd.xlane.f32.xlu0 %v937
  %v1001 = vpop.xlane.xlu0 %1000
  %1002 = vadd.xlane.f32.xlu0 %v939
  %v1003 = vpop.xlane.xlu0 %1002
  %1004 = vadd.xlane.f32.xlu0 %v941
  %v1005 = vpop.xlane.xlu0 %1004
  %1006 = vadd.xlane.f32.xlu0 %v943
  %v1007 = vpop.xlane.xlu0 %1006
  %1008 = vadd.xlane.f32.xlu0 %v945
  %v1009 = vpop.xlane.xlu0 %1008
  %1010 = vadd.xlane.f32.xlu0 %v947
  %v1011 = vpop.xlane.xlu0 %1010
  %1012 = vadd.xlane.f32.xlu0 %v949
  %v1013 = vpop.xlane.xlu0 %1012
  %1014 = vadd.xlane.f32.xlu0 %v951
  %v1015 = vpop.xlane.xlu0 %1014
  %1016 = vadd.xlane.f32.xlu0 %v953
  %v1017 = vpop.xlane.xlu0 %1016
  %1018 = vadd.xlane.f32.xlu0 %v955
  %v1019 = vpop.xlane.xlu0 %1018
  %1020 = vadd.xlane.f32.xlu0 %v957
  %v1021 = vpop.xlane.xlu0 %1020
  %1022 = vadd.xlane.f32.xlu0 %v959
  %v1023 = vpop.xlane.xlu0 %1022
  %1024 = vadd.xlane.f32.xlu0 %v961
  %v1025 = vpop.xlane.xlu0 %1024
  %1026 = vadd.xlane.f32.xlu0 %v963
  %v1027 = vpop.xlane.xlu0 %1026
  %1028 = vadd.xlane.f32.xlu0 %v965
  %v1029 = vpop.xlane.xlu0 %1028
  %1030 = vadd.xlane.f32.xlu0 %v967
  %v1031 = vpop.xlane.xlu0 %1030
  %1032 = vadd.xlane.f32.xlu0 %v969
  %v1033 = vpop.xlane.xlu0 %1032
  %1034 = vadd.xlane.f32.xlu0 %v971
  %v1035 = vpop.xlane.xlu0 %1034
  %1036 = vadd.xlane.f32.xlu0 %v973
  %v1037 = vpop.xlane.xlu0 %1036
  %1038 = vadd.xlane.f32.xlu0 %v975
  %v1039 = vpop.xlane.xlu0 %1038
  %1040 = vadd.xlane.f32.xlu0 %v977
  %v1041 = vpop.xlane.xlu0 %1040
  %1042 = vadd.xlane.f32.xlu0 %v979
  %v1043 = vpop.xlane.xlu0 %1042
  %1044 = vadd.xlane.f32.xlu0 %v981
  %v1045 = vpop.xlane.xlu0 %1044
  %1046 = vadd.xlane.f32.xlu0 %v983
  %v1047 = vpop.xlane.xlu0 %1046
  %1048 = vadd.xlane.f32.xlu0 %v985
  %v1049 = vpop.xlane.xlu0 %1048
  %1050 = vadd.xlane.f32.xlu0 %v987
  %v1051 = vpop.xlane.xlu0 %1050
  %v1052 = vrcp.pop %v989
  %v1053 = vrcp.pop %v991
  %v1054 = vrcp.pop %v993
  %v1055 = vrcp.pop %v995
  %v1056 = vrcp.pop %v997
  %v1057 = vrcp.pop %v999
  %v1058 = vrcp.pop %v1001
  %v1059 = vrcp.pop %v1003
  %v1060 = vrcp.pop %v1005
  %v1061 = vrcp.pop %v1007
  %v1062 = vrcp.pop %v1009
  %v1063 = vrcp.pop %v1011
  %v1064 = vrcp.pop %v1013
  %v1065 = vrcp.pop %v1015
  %v1066 = vrcp.pop %v1017
  %v1067 = vrcp.pop %v1019
  %v1068 = vrcp.pop %v1021
  %v1069 = vrcp.pop %v1023
  %v1070 = vrcp.pop %v1025
  %v1071 = vrcp.pop %v1027
  %v1072 = vrcp.pop %v1029
  %v1073 = vrcp.pop %v1031
  %v1074 = vrcp.pop %v1033
  %v1075 = vrcp.pop %v1035
  %v1076 = vrcp.pop %v1037
  %v1077 = vrcp.pop %v1039
  %v1078 = vrcp.pop %v1041
  %v1079 = vrcp.pop %v1043
  %v1080 = vrcp.pop %v1045
  %v1081 = vrcp.pop %v1047
  %v1082 = vrcp.pop %v1049
  %v1083 = vrcp.pop %v1051
  %v1084 = vmul.f32 %v925, %v1052
  %v1085 = vmul.f32 %v927, %v1053
  %v1086 = vmul.f32 %v929, %v1054
  %v1087 = vmul.f32 %v931, %v1055
  %v1088 = vmul.f32 %v933, %v1056
  %v1089 = vmul.f32 %v935, %v1057
  %v1090 = vmul.f32 %v937, %v1058
  %v1091 = vmul.f32 %v939, %v1059
  %v1092 = vmul.f32 %v941, %v1060
  %v1093 = vmul.f32 %v943, %v1061
  %v1094 = vmul.f32 %v945, %v1062
  %v1095 = vmul.f32 %v947, %v1063
  %v1096 = vmul.f32 %v949, %v1064
  %v1097 = vmul.f32 %v951, %v1065
  %v1098 = vmul.f32 %v953, %v1066
  %v1099 = vmul.f32 %v955, %v1067
  %v1100 = vmul.f32 %v957, %v1068
  %v1101 = vmul.f32 %v959, %v1069
  %v1102 = vmul.f32 %v961, %v1070
  %v1103 = vmul.f32 %v963, %v1071
  %v1104 = vmul.f32 %v965, %v1072
  %v1105 = vmul.f32 %v967, %v1073
  %v1106 = vmul.f32 %v969, %v1074
  %v1107 = vmul.f32 %v971, %v1075
  %v1108 = vmul.f32 %v973, %v1076
  %v1109 = vmul.f32 %v975, %v1077
  %v1110 = vmul.f32 %v977, %v1078
  %v1111 = vmul.f32 %v979, %v1079
  %v1112 = vmul.f32 %v981, %v1080
  %v1113 = vmul.f32 %v983, %v1081
  %v1114 = vmul.f32 %v985, %v1082
  %v1115 = vmul.f32 %v987, %v1083
  %v1116 = vpack.c.bf16 %v1085, %v1084
  %v1117 = vpack.c.bf16 %v1087, %v1086
  %v1118 = vpack.c.bf16 %v1089, %v1088
  %v1119 = vpack.c.bf16 %v1091, %v1090
  %v1120 = vpack.c.bf16 %v1093, %v1092
  %v1121 = vpack.c.bf16 %v1095, %v1094
  %v1122 = vpack.c.bf16 %v1097, %v1096
  %v1123 = vpack.c.bf16 %v1099, %v1098
  %v1124 = vpack.c.bf16 %v1101, %v1100
  %v1125 = vpack.c.bf16 %v1103, %v1102
  %v1126 = vpack.c.bf16 %v1105, %v1104
  %v1127 = vpack.c.bf16 %v1107, %v1106
  %v1128 = vpack.c.bf16 %v1109, %v1108
  %v1129 = vpack.c.bf16 %v1111, %v1110
  %v1130 = vpack.c.bf16 %v1113, %v1112
  %v1131 = vpack.c.bf16 %v1115, %v1114
  %1132 = vmatprep.subr.bf16.mxu0 0
  %1133 = vmatpush1.bf16.msra.mxu0 %v455
  %1134 = vmatprep.subr.bf16.mxu0 0
  %1135 = vmatpush1.bf16.msra.mxu0 %v454
  %1136 = vmatprep.subr.bf16.mxu0 0
  %1137 = vmatpush1.bf16.msra.mxu0 %v453
  %1138 = vmatprep.subr.bf16.mxu0 0
  %1139 = vmatpush1.bf16.msra.mxu0 %v452
  %1140 = vmatprep.subr.bf16.mxu0 0
  %1141 = vmatpush1.bf16.msra.mxu0 %v451
  %1142 = vmatprep.subr.bf16.mxu0 0
  %1143 = vmatpush1.bf16.msra.mxu0 %v450
  %1144 = vmatprep.subr.bf16.mxu0 0
  %1145 = vmatpush1.bf16.msra.mxu0 %v449
  %1146 = vmatprep.subr.bf16.mxu0 0
  %1147 = vmatpush1.bf16.msra.mxu0 %v448
  %1148 = vmatprep.subr.bf16.mxu0 0
  %1149 = vmatpush2.bf16.msra.mxu0 0
  %1150 = vmatprep.subr.bf16.mxu0 0
  %1151 = vmatpush2.bf16.msra.mxu0 0
  %1152 = vmatprep.subr.bf16.mxu0 0
  %1153 = vmatpush2.bf16.msra.mxu0 0
  %1154 = vmatprep.subr.bf16.mxu0 0
  %1155 = vmatpush2.bf16.msra.mxu0 0
  %1156 = vmatprep.subr.bf16.mxu0 0
  %1157 = vmatpush2.bf16.msra.mxu0 0
  %1158 = vmatprep.subr.bf16.mxu0 0
  %1159 = vmatpush2.bf16.msra.mxu0 0
  %1160 = vmatprep.subr.bf16.mxu0 0
  %1161 = vmatpush2.bf16.msra.mxu0 0
  %1162 = vmatprep.subr.bf16.mxu0 0
  %1163 = vmatpush2.bf16.msra.mxu0 0
  %1164 = vmatprep.mubr.bf16.mxu0 0
  %1165 = vmatmul.mubr.bf16.gmra.mxu0 %v1116
  %v1166 = vpop.f32.mrf.mxu0
  %v1167 = vadd.f32 0.0, %v1166
  %v1168 = vpop.f32.mrf.mxu0
  %v1169 = vpop.f32.mrf.mxu0
  %v1170 = vadd.f32 0.0, %v1169
  %v1171 = vpop.f32.mrf.mxu0
  %1172 = vmatprep.mubr.bf16.mxu0 0
  %1173 = vmatmul.mubr.bf16.gmra.mxu0 %v1117
  %v1174 = vpop.f32.mrf.mxu0
  %v1175 = vadd.f32 0.0, %v1174
  %v1176 = vpop.f32.mrf.mxu0
  %v1177 = vpop.f32.mrf.mxu0
  %v1178 = vadd.f32 0.0, %v1177
  %v1179 = vpop.f32.mrf.mxu0
  %1180 = vmatprep.mubr.bf16.mxu0 0
  %1181 = vmatmul.mubr.bf16.gmra.mxu0 %v1118
  %v1182 = vpop.f32.mrf.mxu0
  %v1183 = vadd.f32 0.0, %v1182
  %v1184 = vpop.f32.mrf.mxu0
  %v1185 = vpop.f32.mrf.mxu0
  %v1186 = vadd.f32 0.0, %v1185
  %v1187 = vpop.f32.mrf.mxu0
  %1188 = vmatprep.mubr.bf16.mxu0 0
  %1189 = vmatmul.mubr.bf16.gmra.mxu0 %v1119
  %v1190 = vpop.f32.mrf.mxu0
  %v1191 = vadd.f32 0.0, %v1190
  %v1192 = vpop.f32.mrf.mxu0
  %v1193 = vpop.f32.mrf.mxu0
  %v1194 = vadd.f32 0.0, %v1193
  %v1195 = vpop.f32.mrf.mxu0
  %1196 = vmatprep.mubr.bf16.mxu0 0
  %1197 = vmatmul.mubr.bf16.gmra.mxu0 %v1120
  %v1198 = vpop.f32.mrf.mxu0
  %v1199 = vadd.f32 0.0, %v1198
  %v1200 = vpop.f32.mrf.mxu0
  %v1201 = vpop.f32.mrf.mxu0
  %v1202 = vadd.f32 0.0, %v1201
  %v1203 = vpop.f32.mrf.mxu0
  %1204 = vmatprep.mubr.bf16.mxu0 0
  %1205 = vmatmul.mubr.bf16.gmra.mxu0 %v1121
  %v1206 = vpop.f32.mrf.mxu0
  %v1207 = vadd.f32 0.0, %v1206
  %v1208 = vpop.f32.mrf.mxu0
  %v1209 = vpop.f32.mrf.mxu0
  %v1210 = vadd.f32 0.0, %v1209
  %v1211 = vpop.f32.mrf.mxu0
  %1212 = vmatprep.mubr.bf16.mxu0 0
  %1213 = vmatmul.mubr.bf16.gmra.mxu0 %v1122
  %v1214 = vpop.f32.mrf.mxu0
  %v1215 = vadd.f32 0.0, %v1214
  %v1216 = vpop.f32.mrf.mxu0
  %v1217 = vpop.f32.mrf.mxu0
  %v1218 = vadd.f32 0.0, %v1217
  %v1219 = vpop.f32.mrf.mxu0
  %1220 = vmatprep.mubr.bf16.mxu0 0
  %1221 = vmatmul.mubr.bf16.gmra.mxu0 %v1123
  %v1222 = vpop.f32.mrf.mxu0
  %v1223 = vadd.f32 0.0, %v1222
  %v1224 = vpop.f32.mrf.mxu0
  %v1225 = vpop.f32.mrf.mxu0
  %v1226 = vadd.f32 0.0, %v1225
  %v1227 = vpop.f32.mrf.mxu0
  %1228 = vdwg.mxu0
  %1229 = vmatprep.subr.bf16.mxu0 0
  %1230 = vmatpush1.bf16.msra.mxu0 %v463
  %1231 = vmatprep.subr.bf16.mxu0 0
  %1232 = vmatpush1.bf16.msra.mxu0 %v462
  %1233 = vmatprep.subr.bf16.mxu0 0
  %1234 = vmatpush1.bf16.msra.mxu0 %v461
  %1235 = vmatprep.subr.bf16.mxu0 0
  %1236 = vmatpush1.bf16.msra.mxu0 %v460
  %1237 = vmatprep.subr.bf16.mxu0 0
  %1238 = vmatpush1.bf16.msra.mxu0 %v459
  %1239 = vmatprep.subr.bf16.mxu0 0
  %1240 = vmatpush1.bf16.msra.mxu0 %v458
  %1241 = vmatprep.subr.bf16.mxu0 0
  %1242 = vmatpush1.bf16.msra.mxu0 %v457
  %1243 = vmatprep.subr.bf16.mxu0 0
  %1244 = vmatpush1.bf16.msra.mxu0 %v456
  %1245 = vmatprep.subr.bf16.mxu0 0
  %1246 = vmatpush2.bf16.msra.mxu0 0
  %1247 = vmatprep.subr.bf16.mxu0 0
  %1248 = vmatpush2.bf16.msra.mxu0 0
  %1249 = vmatprep.subr.bf16.mxu0 0
  %1250 = vmatpush2.bf16.msra.mxu0 0
  %1251 = vmatprep.subr.bf16.mxu0 0
  %1252 = vmatpush2.bf16.msra.mxu0 0
  %1253 = vmatprep.subr.bf16.mxu0 0
  %1254 = vmatpush2.bf16.msra.mxu0 0
  %1255 = vmatprep.subr.bf16.mxu0 0
  %1256 = vmatpush2.bf16.msra.mxu0 0
  %1257 = vmatprep.subr.bf16.mxu0 0
  %1258 = vmatpush2.bf16.msra.mxu0 0
  %1259 = vmatprep.subr.bf16.mxu0 0
  %1260 = vmatpush2.bf16.msra.mxu0 0
  %1261 = vmatprep.mubr.bf16.mxu0 0
  %1262 = vmatmul.mubr.bf16.gmra.mxu0 %v1124
  %v1263 = vpop.f32.mrf.mxu0
  %v1264 = vadd.f32 0.0, %v1263
  %v1265 = vpop.f32.mrf.mxu0
  %v1266 = vpop.f32.mrf.mxu0
  %v1267 = vadd.f32 0.0, %v1266
  %v1268 = vpop.f32.mrf.mxu0
  %1269 = vmatprep.mubr.bf16.mxu0 0
  %1270 = vmatmul.mubr.bf16.gmra.mxu0 %v1125
  %v1271 = vpop.f32.mrf.mxu0
  %v1272 = vadd.f32 0.0, %v1271
  %v1273 = vpop.f32.mrf.mxu0
  %v1274 = vpop.f32.mrf.mxu0
  %v1275 = vadd.f32 0.0, %v1274
  %v1276 = vpop.f32.mrf.mxu0
  %1277 = vmatprep.mubr.bf16.mxu0 0
  %1278 = vmatmul.mubr.bf16.gmra.mxu0 %v1126
  %v1279 = vpop.f32.mrf.mxu0
  %v1280 = vadd.f32 0.0, %v1279
  %v1281 = vpop.f32.mrf.mxu0
  %v1282 = vpop.f32.mrf.mxu0
  %v1283 = vadd.f32 0.0, %v1282
  %v1284 = vpop.f32.mrf.mxu0
  %1285 = vmatprep.mubr.bf16.mxu0 0
  %1286 = vmatmul.mubr.bf16.gmra.mxu0 %v1127
  %v1287 = vpop.f32.mrf.mxu0
  %v1288 = vadd.f32 0.0, %v1287
  %v1289 = vpop.f32.mrf.mxu0
  %v1290 = vpop.f32.mrf.mxu0
  %v1291 = vadd.f32 0.0, %v1290
  %v1292 = vpop.f32.mrf.mxu0
  %1293 = vmatprep.mubr.bf16.mxu0 0
  %1294 = vmatmul.mubr.bf16.gmra.mxu0 %v1128
  %v1295 = vpop.f32.mrf.mxu0
  %v1296 = vadd.f32 0.0, %v1295
  %v1297 = vpop.f32.mrf.mxu0
  %v1298 = vpop.f32.mrf.mxu0
  %v1299 = vadd.f32 0.0, %v1298
  %v1300 = vpop.f32.mrf.mxu0
  %1301 = vmatprep.mubr.bf16.mxu0 0
  %1302 = vmatmul.mubr.bf16.gmra.mxu0 %v1129
  %v1303 = vpop.f32.mrf.mxu0
  %v1304 = vadd.f32 0.0, %v1303
  %v1305 = vpop.f32.mrf.mxu0
  %v1306 = vpop.f32.mrf.mxu0
  %v1307 = vadd.f32 0.0, %v1306
  %v1308 = vpop.f32.mrf.mxu0
  %1309 = vmatprep.mubr.bf16.mxu0 0
  %1310 = vmatmul.mubr.bf16.gmra.mxu0 %v1130
  %v1311 = vpop.f32.mrf.mxu0
  %v1312 = vadd.f32 0.0, %v1311
  %v1313 = vpop.f32.mrf.mxu0
  %v1314 = vpop.f32.mrf.mxu0
  %v1315 = vadd.f32 0.0, %v1314
  %v1316 = vpop.f32.mrf.mxu0
  %1317 = vmatprep.mubr.bf16.mxu0 0
  %1318 = vmatmul.mubr.bf16.gmra.mxu0 %v1131
  %v1319 = vpop.f32.mrf.mxu0
  %v1320 = vadd.f32 0.0, %v1319
  %v1321 = vpop.f32.mrf.mxu0
  %v1322 = vpop.f32.mrf.mxu0
  %v1323 = vadd.f32 0.0, %v1322
  %v1324 = vpop.f32.mrf.mxu0
  %1325 = vdwg.mxu0
  %vm1326 = vcmask 261120
  %1327 = vst.msk [vmem:[%s3] sm:$0xff] %vm1326, %v1167
  %1328 = vst.msk [vmem:[%s3 + $0x8] sm:$0xff] %vm1326, %v1170
  %1329 = vst.msk [vmem:[%s3 + $0x10] sm:$0xff] %vm1326, %v1175
  %1330 = vst.msk [vmem:[%s3 + $0x18] sm:$0xff] %vm1326, %v1178
  %1331 = vst.msk [vmem:[%s3 + $0x20] sm:$0xff] %vm1326, %v1183
  %1332 = vst.msk [vmem:[%s3 + $0x28] sm:$0xff] %vm1326, %v1186
  %1333 = vst.msk [vmem:[%s3 + $0x30] sm:$0xff] %vm1326, %v1191
  %1334 = vst.msk [vmem:[%s3 + $0x38] sm:$0xff] %vm1326, %v1194
  %1335 = vst.msk [vmem:[%s3 + $0x40] sm:$0xff] %vm1326, %v1199
  %1336 = vst.msk [vmem:[%s3 + $0x48] sm:$0xff] %vm1326, %v1202
  %1337 = vst.msk [vmem:[%s3 + $0x50] sm:$0xff] %vm1326, %v1207
  %1338 = vst.msk [vmem:[%s3 + $0x58] sm:$0xff] %vm1326, %v1210
  %1339 = vst.msk [vmem:[%s3 + $0x60] sm:$0xff] %vm1326, %v1215
  %1340 = vst.msk [vmem:[%s3 + $0x68] sm:$0xff] %vm1326, %v1218
  %1341 = vst.msk [vmem:[%s3 + $0x70] sm:$0xff] %vm1326, %v1223
  %1342 = vst.msk [vmem:[%s3 + $0x78] sm:$0xff] %vm1326, %v1226
  %1343 = vst.msk [vmem:[%s3 + $0x80] sm:$0xff] %vm1326, %v1264
  %1344 = vst.msk [vmem:[%s3 + $0x88] sm:$0xff] %vm1326, %v1267
  %1345 = vst.msk [vmem:[%s3 + $0x90] sm:$0xff] %vm1326, %v1272
  %1346 = vst.msk [vmem:[%s3 + $0x98] sm:$0xff] %vm1326, %v1275
  %1347 = vst.msk [vmem:[%s3 + $0xa0] sm:$0xff] %vm1326, %v1280
  %1348 = vst.msk [vmem:[%s3 + $0xa8] sm:$0xff] %vm1326, %v1283
  %1349 = vst.msk [vmem:[%s3 + $0xb0] sm:$0xff] %vm1326, %v1288
  %1350 = vst.msk [vmem:[%s3 + $0xb8] sm:$0xff] %vm1326, %v1291
  %1351 = vst.msk [vmem:[%s3 + $0xc0] sm:$0xff] %vm1326, %v1296
  %1352 = vst.msk [vmem:[%s3 + $0xc8] sm:$0xff] %vm1326, %v1299
  %1353 = vst.msk [vmem:[%s3 + $0xd0] sm:$0xff] %vm1326, %v1304
  %1354 = vst.msk [vmem:[%s3 + $0xd8] sm:$0xff] %vm1326, %v1307
  %1355 = vst.msk [vmem:[%s3 + $0xe0] sm:$0xff] %vm1326, %v1312
  %1356 = vst.msk [vmem:[%s3 + $0xe8] sm:$0xff] %vm1326, %v1315
  %1357 = vst.msk [vmem:[%s3 + $0xf0] sm:$0xff] %vm1326, %v1320
  %1358 = vst.msk [vmem:[%s3 + $0xf8] sm:$0xff] %vm1326, %v1323
  // Predicated region
  $region14: #{tpu_custom_call.1} parent=0 // pred_check
    _
  $region15: #{tpu_custom_call.1} parent=0 // pred_check_branch
    %1360 = sbr.rel (0) target = $region17
  $region16: #{tpu_custom_call.1} parent=0 // pred_region
    _
  $region17: #{tpu_custom_call.1} parent=0 // pred_fallthru
    _
  // Predicated region
  $region18: #{tpu_custom_call.1} parent=0 // pred_check
    _
  $region19: #{tpu_custom_call.1} parent=0 // pred_check_branch
    %1362 = sbr.rel (0) target = $region21
  $region20: #{tpu_custom_call.1} parent=0 // pred_region
    _
  $region21: #{tpu_custom_call.1} parent=0 // pred_fallthru
    _

</llo_original>
